<compile_context>
chip_gen: v7x
topology: tpu7x:2x2x1
jax: 0.10.0
libtpu: 0.0.40
codegen_flags: <defaults>
</compile_context>

<pallas_src>
import functools

import jax
import jax.numpy as jnp
import numpy as np
from jax import lax
from jax.experimental import pallas as pl
from jax.experimental.pallas import tpu as pltpu


# -----------------------------------------------------------------------------
# Kernel: one paired (forward + backward) sweep along the leading axis.
# -----------------------------------------------------------------------------
def _paired_sweep_kernel(x_ref, wf_ref, bf_ref, wb_ref, bb_ref,
                         fwd_ref, bwd_ref):
    # x_ref            : (S, Gt, 128)   input view for this lane tile
    # wf/bf, wb/bb     : (Gt, 128)      per-lane weight / bias (fwd, bwd dirs)
    # fwd_ref, bwd_ref : (S, Gt, 128)   outputs for the two directions
    S = x_ref.shape[0]

    wf = wf_ref[...]
    bf = bf_ref[...]
    wb = wb_ref[...]
    bb = bb_ref[...]

    # Boundary elements: raw input pass-through (no weight / bias / ReLU).
    h_f = x_ref[0]
    h_b = x_ref[S - 1]
    fwd_ref[0] = h_f
    bwd_ref[S - 1] = h_b

    def step(i, j, h_f, h_b):
        # x + b is independent of h -> off the serial dependent chain.
        xf = x_ref[i] + bf
        xb = x_ref[j] + bb
        h_f = jnp.maximum(h_f * wf + xf, 0.0)
        h_b = jnp.maximum(h_b * wb + xb, 0.0)
        fwd_ref[i] = h_f
        bwd_ref[j] = h_b
        return h_f, h_b

    if S <= 64:
        # Small scans (test shape): static unroll.
        for i in range(1, S):
            h_f, h_b = step(i, S - 1 - i, h_f, h_b)
    else:
        # Long scans: bounded-size loop body, modest unroll for LLO visibility.
        def body(i, carry):
            h_f, h_b = carry
            return step(i, S - 1 - i, h_f, h_b)

        lax.fori_loop(1, S, body, (h_f, h_b), unroll=4)


# -----------------------------------------------------------------------------
# Wrapper helpers.
# -----------------------------------------------------------------------------
def _pick_group_tile(G, S, budget_bytes=24 << 20):
    """Largest lane-group tile fitting the VMEM budget (double-buffered)."""
    # Per grid step: 1 input block + 2 output blocks, x2 for double buffering.
    per_group = 6 * S * 128 * 4
    max_gt = max(1, budget_bytes // per_group)
    if G <= max_gt:
        return G
    # Prefer a divisor of G that is a multiple of 8 (clean (8,128) tiles).
    for gt in range(min(G, max_gt), 7, -1):
        if G % gt == 0 and gt % 8 == 0:
            return gt
    # Fall back to a single tile (correct; may need more VMEM).
    return G


def _sweep_pair(xv, w_f, b_f, w_b, b_b):
    """Run forward+backward sweeps along axis 0 of xv.

    xv: (S, G, 128) f32; w_*/b_*: (G, 128) f32 per-lane scalars.
    Returns (fwd, bwd), each (S, G, 128).
    """
    S, G, _ = xv.shape
    gt = _pick_group_tile(G, S)
    grid = (G // gt,)

    spec_x = pl.BlockSpec((S, gt, 128), lambda i: (0, i, 0))
    spec_w = pl.BlockSpec((gt, 128), lambda i: (i, 0))

    # VMEM need: (1 in + 2 out) blocks x2 buffers + 4 weight rows x2 buffers.
    need = 6 * S * gt * 128 * 4 + 8 * gt * 128 * 4
    vmem_limit = int(min(max(2 * need, 32 * 1024 * 1024), 96 * 1024 * 1024))

    # 4 VALU ops (mul, add, add, max) per interior element per direction.
    flops = int(2 * 4 * (S - 1) * G * 128)
    bytes_accessed = int(4 * (3 * S * G * 128 + 4 * G * 128))

    fwd, bwd = pl.pallas_call(
        _paired_sweep_kernel,
        out_shape=(
            jax.ShapeDtypeStruct((S, G, 128), jnp.float32),
            jax.ShapeDtypeStruct((S, G, 128), jnp.float32),
        ),
        grid=grid,
        in_specs=[spec_x, spec_w, spec_w, spec_w, spec_w],
        out_specs=(spec_x, spec_x),
        compiler_params=pltpu.CompilerParams(
            dimension_semantics=("parallel",),
            vmem_limit_bytes=vmem_limit,
        ),
        cost_estimate=pl.CostEstimate(
            flops=flops, transcendentals=0, bytes_accessed=bytes_accessed),
    )(xv, w_f, b_f, w_b, b_b)
    return fwd, bwd


def _bcast_lane(v, B, C, inner, L_pad):
    """(C,) per-channel scalar -> (L_pad//128, 128) in (b, c, inner) lane order."""
    row = jnp.broadcast_to(v.reshape(1, C, 1), (B, C, inner)).reshape(-1)
    L = row.shape[0]
    if L_pad != L:
        row = jnp.pad(row, (0, L_pad - L))
    return row.reshape(L_pad // 128, 128)


@jax.jit
def spacial_irnn_forward(x, w_up, w_right, w_down, w_left,
                         b_up, b_right, b_down, b_left):
    """x: (B, C, H, W) f32; w_*/b_*: (C,) f32 (flattened depthwise 1x1 conv).

    Returns (up, right, down, left), each (B, C, H, W), matching the irnn op
    used by Spacial_IRNN.forward.
    """
    x = x.astype(jnp.float32)
    B, C, H, W = x.shape

    def pad128(n):
        return ((n + 127) // 128) * 128

    Lh, Lw = B * C * W, B * C * H
    Lh_p, Lw_p = pad128(Lh), pad128(Lw)
    Gh, Gw = Lh_p // 128, Lw_p // 128

    # Lane-dense sweep views (padded lanes are zero and stay zero under the
    # recurrence because their weights/biases are padded with zeros).
    xh = jnp.transpose(x, (2, 0, 1, 3)).reshape(H, Lh)        # [h, (b,c,w)]
    xw = jnp.transpose(x, (3, 0, 1, 2)).reshape(W, Lw)        # [w, (b,c,h)]
    if Lh_p != Lh:
        xh = jnp.pad(xh, ((0, 0), (0, Lh_p - Lh)))
    if Lw_p != Lw:
        xw = jnp.pad(xw, ((0, 0), (0, Lw_p - Lw)))
    xh = xh.reshape(H, Gh, 128)
    xw = xw.reshape(W, Gw, 128)

    bch = functools.partial(_bcast_lane, B=B, C=C, inner=W, L_pad=Lh_p)
    bcw = functools.partial(_bcast_lane, B=B, C=C, inner=H, L_pad=Lw_p)

    # Row sweeps: forward = down (top->bottom), backward = up (bottom->top).
    down_f, up_f = _sweep_pair(xh, bch(w_down), bch(b_down),
                               bch(w_up), bch(b_up))
    # Column sweeps: forward = right (left->right), backward = left.
    right_f, left_f = _sweep_pair(xw, bcw(w_right), bcw(b_right),
                                  bcw(w_left), bcw(b_left))

    def un_h(o):  # (H, Gh, 128) -> (B, C, H, W)
        o = o.reshape(H, Lh_p)[:, :Lh].reshape(H, B, C, W)
        return jnp.transpose(o, (1, 2, 0, 3))

    def un_w(o):  # (W, Gw, 128) -> (B, C, H, W)
        o = o.reshape(W, Lw_p)[:, :Lw].reshape(W, B, C, H)
        return jnp.transpose(o, (1, 2, 3, 0))

    return un_h(up_f), un_w(right_f), un_h(down_f), un_w(left_f)


# -----------------------------------------------------------------------------
# Pure-JAX reference (matches the irnn CUDA op semantics).
# -----------------------------------------------------------------------------
def _reference_irnn(x, w_up, w_right, w_down, w_left,
                    b_up, b_right, b_down, b_left):
    B, C, H, W = x.shape

    def bc(v):
        return v.reshape(1, C, 1)

    # down: top -> bottom
    rows = [x[:, :, 0, :]]
    for h in range(1, H):
        rows.append(jnp.maximum(rows[-1] * bc(w_down) + bc(b_down)
                                + x[:, :, h, :], 0.0))
    out_down = jnp.stack(rows, axis=2)

    # up: bottom -> top
    rows = [None] * H
    rows[H - 1] = x[:, :, H - 1, :]
    for h in range(H - 2, -1, -1):
        rows[h] = jnp.maximum(rows[h + 1] * bc(w_up) + bc(b_up)
                              + x[:, :, h, :], 0.0)
    out_up = jnp.stack(rows, axis=2)

    # right: left -> right
    cols = [x[:, :, :, 0]]
    for w in range(1, W):
        cols.append(jnp.maximum(cols[-1] * bc(w_right) + bc(b_right)
                                + x[:, :, :, w], 0.0))
    out_right = jnp.stack(cols, axis=3)

    # left: right -> left
    cols = [None] * W
    cols[W - 1] = x[:, :, :, W - 1]
    for w in range(W - 2, -1, -1):
        cols[w] = jnp.maximum(cols[w + 1] * bc(w_left) + bc(b_left)
                              + x[:, :, :, w], 0.0)
    out_left = jnp.stack(cols, axis=3)

    return out_up, out_right, out_down, out_left


if __name__ == "__main__":
    B, C, H, W = 2, 4, 16, 16
    alpha = 1.0

    key = jax.random.PRNGKey(0)
    ks = jax.random.split(key, 9)
    x = jax.random.normal(ks[0], (B, C, H, W), jnp.float32)

    # The module initializes all depthwise weights to alpha; they are learnable
    # per-channel, so perturb them to make the check direction/channel aware.
    w_up = alpha + 0.1 * jax.random.normal(ks[1], (C,), jnp.float32)
    w_right = alpha + 0.1 * jax.random.normal(ks[2], (C,), jnp.float32)
    w_down = alpha + 0.1 * jax.random.normal(ks[3], (C,), jnp.float32)
    w_left = alpha + 0.1 * jax.random.normal(ks[4], (C,), jnp.float32)
    b_up = 0.1 * jax.random.normal(ks[5], (C,), jnp.float32)
    b_right = 0.1 * jax.random.normal(ks[6], (C,), jnp.float32)
    b_down = 0.1 * jax.random.normal(ks[7], (C,), jnp.float32)
    b_left = 0.1 * jax.random.normal(ks[8], (C,), jnp.float32)

    outs = spacial_irnn_forward(x, w_up, w_right, w_down, w_left,
                                b_up, b_right, b_down, b_left)
    outs = jax.block_until_ready(outs)

    refs = _reference_irnn(x, w_up, w_right, w_down, w_left,
                           b_up, b_right, b_down, b_left)

    for o, r in zip(outs, refs):
        assert o.shape == (B, C, H, W)
        np.testing.assert_allclose(np.asarray(o), np.asarray(r),
                                   rtol=1e-5, atol=1e-5)

    print("KERNEL_OK")
</pallas_src>

<mosaic_0001>
module attributes {stable_mosaic.version = 11 : i64} {
  func.func @_paired_sweep_kernel(%arg0: i32, %arg1: memref<16x1x128xf32, #tpu.memory_space<vmem>>, %arg2: memref<1x128xf32, #tpu.memory_space<vmem>>, %arg3: memref<1x128xf32, #tpu.memory_space<vmem>>, %arg4: memref<1x128xf32, #tpu.memory_space<vmem>>, %arg5: memref<1x128xf32, #tpu.memory_space<vmem>>, %arg6: memref<16x1x128xf32, #tpu.memory_space<vmem>>, %arg7: memref<16x1x128xf32, #tpu.memory_space<vmem>>) attributes {dimension_semantics = [#tpu.dimension_semantics<parallel>], iteration_bounds = array<i64: 1>, scalar_prefetch = 0 : i64, scratch_operands = 0 : i64, tpu.core_type = #tpu.core_type<tc>, window_params = [{transform_indices = @transform_0, window_bounds = array<i64: 16, 1, 128>}, {transform_indices = @transform_1, window_bounds = array<i64: 1, 128>}, {transform_indices = @transform_2, window_bounds = array<i64: 1, 128>}, {transform_indices = @transform_3, window_bounds = array<i64: 1, 128>}, {transform_indices = @transform_4, window_bounds = array<i64: 1, 128>}, {transform_indices = @transform_5, window_bounds = array<i64: 16, 1, 128>}, {transform_indices = @transform_6, window_bounds = array<i64: 16, 1, 128>}]} {
    %c0 = arith.constant 0 : index
    %c0_0 = arith.constant 0 : index
    %0 = vector.load %arg2[%c0, %c0_0] : memref<1x128xf32, #tpu.memory_space<vmem>>, vector<1x128xf32>
    %c0_1 = arith.constant 0 : index
    %c0_2 = arith.constant 0 : index
    %1 = vector.load %arg3[%c0_1, %c0_2] : memref<1x128xf32, #tpu.memory_space<vmem>>, vector<1x128xf32>
    %c0_3 = arith.constant 0 : index
    %c0_4 = arith.constant 0 : index
    %2 = vector.load %arg4[%c0_3, %c0_4] : memref<1x128xf32, #tpu.memory_space<vmem>>, vector<1x128xf32>
    %c0_5 = arith.constant 0 : index
    %c0_6 = arith.constant 0 : index
    %3 = vector.load %arg5[%c0_5, %c0_6] : memref<1x128xf32, #tpu.memory_space<vmem>>, vector<1x128xf32>
    %c0_7 = arith.constant 0 : index
    %c0_8 = arith.constant 0 : index
    %c0_9 = arith.constant 0 : index
    %4 = vector.load %arg1[%c0_7, %c0_8, %c0_9] : memref<16x1x128xf32, #tpu.memory_space<vmem>>, vector<1x1x128xf32>
    %5 = vector.shape_cast %4 : vector<1x1x128xf32> to vector<1x128xf32>
    %c15 = arith.constant 15 : index
    %c0_10 = arith.constant 0 : index
    %c0_11 = arith.constant 0 : index
    %6 = vector.load %arg1[%c15, %c0_10, %c0_11] : memref<16x1x128xf32, #tpu.memory_space<vmem>>, vector<1x1x128xf32>
    %7 = vector.shape_cast %6 : vector<1x1x128xf32> to vector<1x128xf32>
    %c0_12 = arith.constant 0 : index
    %c0_13 = arith.constant 0 : index
    %c0_14 = arith.constant 0 : index
    %8 = vector.load %arg6[%c0_12, %c0_13, %c0_14] : memref<16x1x128xf32, #tpu.memory_space<vmem>>, vector<1x1x128xf32>
    %9 = vector.shape_cast %8 : vector<1x1x128xf32> to vector<1x128xf32>
    %10 = vector.shape_cast %5 : vector<1x128xf32> to vector<1x1x128xf32>
    tpu.vector_store %arg6[%c0_12, %c0_13, %c0_14], %10 {strides = array<i32>} : memref<16x1x128xf32, #tpu.memory_space<vmem>>, vector<1x1x128xf32>,
    %c15_15 = arith.constant 15 : index
    %c0_16 = arith.constant 0 : index
    %c0_17 = arith.constant 0 : index
    %11 = vector.load %arg7[%c15_15, %c0_16, %c0_17] : memref<16x1x128xf32, #tpu.memory_space<vmem>>, vector<1x1x128xf32>
    %12 = vector.shape_cast %11 : vector<1x1x128xf32> to vector<1x128xf32>
    %13 = vector.shape_cast %7 : vector<1x128xf32> to vector<1x1x128xf32>
    tpu.vector_store %arg7[%c15_15, %c0_16, %c0_17], %13 {strides = array<i32>} : memref<16x1x128xf32, #tpu.memory_space<vmem>>, vector<1x1x128xf32>,
    %c1 = arith.constant 1 : index
    %c0_18 = arith.constant 0 : index
    %c0_19 = arith.constant 0 : index
    %14 = vector.load %arg1[%c1, %c0_18, %c0_19] : memref<16x1x128xf32, #tpu.memory_space<vmem>>, vector<1x1x128xf32>
    %15 = vector.shape_cast %14 : vector<1x1x128xf32> to vector<1x128xf32>
    %16 = arith.addf %15, %1 : vector<1x128xf32>
    %c14 = arith.constant 14 : index
    %c0_20 = arith.constant 0 : index
    %c0_21 = arith.constant 0 : index
    %17 = vector.load %arg1[%c14, %c0_20, %c0_21] : memref<16x1x128xf32, #tpu.memory_space<vmem>>, vector<1x1x128xf32>
    %18 = vector.shape_cast %17 : vector<1x1x128xf32> to vector<1x128xf32>
    %19 = arith.addf %18, %3 : vector<1x128xf32>
    %20 = arith.mulf %5, %0 : vector<1x128xf32>
    %21 = arith.addf %20, %16 : vector<1x128xf32>
    %cst = arith.constant 0.000000e+00 : f32
    %22 = vector.broadcast %cst : f32 to vector<1x128xf32>
    %23 = arith.maximumf %21, %22 : vector<1x128xf32>
    %24 = arith.mulf %7, %2 : vector<1x128xf32>
    %25 = arith.addf %24, %19 : vector<1x128xf32>
    %cst_22 = arith.constant 0.000000e+00 : f32
    %26 = vector.broadcast %cst_22 : f32 to vector<1x128xf32>
    %27 = arith.maximumf %25, %26 : vector<1x128xf32>
    %c1_23 = arith.constant 1 : index
    %c0_24 = arith.constant 0 : index
    %c0_25 = arith.constant 0 : index
    %28 = vector.load %arg6[%c1_23, %c0_24, %c0_25] : memref<16x1x128xf32, #tpu.memory_space<vmem>>, vector<1x1x128xf32>
    %29 = vector.shape_cast %28 : vector<1x1x128xf32> to vector<1x128xf32>
    %30 = vector.shape_cast %23 : vector<1x128xf32> to vector<1x1x128xf32>
    tpu.vector_store %arg6[%c1_23, %c0_24, %c0_25], %30 {strides = array<i32>} : memref<16x1x128xf32, #tpu.memory_space<vmem>>, vector<1x1x128xf32>,
    %c14_26 = arith.constant 14 : index
    %c0_27 = arith.constant 0 : index
    %c0_28 = arith.constant 0 : index
    %31 = vector.load %arg7[%c14_26, %c0_27, %c0_28] : memref<16x1x128xf32, #tpu.memory_space<vmem>>, vector<1x1x128xf32>
    %32 = vector.shape_cast %31 : vector<1x1x128xf32> to vector<1x128xf32>
    %33 = vector.shape_cast %27 : vector<1x128xf32> to vector<1x1x128xf32>
    tpu.vector_store %arg7[%c14_26, %c0_27, %c0_28], %33 {strides = array<i32>} : memref<16x1x128xf32, #tpu.memory_space<vmem>>, vector<1x1x128xf32>,
    %c2 = arith.constant 2 : index
    %c0_29 = arith.constant 0 : index
    %c0_30 = arith.constant 0 : index
    %34 = vector.load %arg1[%c2, %c0_29, %c0_30] : memref<16x1x128xf32, #tpu.memory_space<vmem>>, vector<1x1x128xf32>
    %35 = vector.shape_cast %34 : vector<1x1x128xf32> to vector<1x128xf32>
    %36 = arith.addf %35, %1 : vector<1x128xf32>
    %c13 = arith.constant 13 : index
    %c0_31 = arith.constant 0 : index
    %c0_32 = arith.constant 0 : index
    %37 = vector.load %arg1[%c13, %c0_31, %c0_32] : memref<16x1x128xf32, #tpu.memory_space<vmem>>, vector<1x1x128xf32>
    %38 = vector.shape_cast %37 : vector<1x1x128xf32> to vector<1x128xf32>
    %39 = arith.addf %38, %3 : vector<1x128xf32>
    %40 = arith.mulf %23, %0 : vector<1x128xf32>
    %41 = arith.addf %40, %36 : vector<1x128xf32>
    %cst_33 = arith.constant 0.000000e+00 : f32
    %42 = vector.broadcast %cst_33 : f32 to vector<1x128xf32>
    %43 = arith.maximumf %41, %42 : vector<1x128xf32>
    %44 = arith.mulf %27, %2 : vector<1x128xf32>
    %45 = arith.addf %44, %39 : vector<1x128xf32>
    %cst_34 = arith.constant 0.000000e+00 : f32
    %46 = vector.broadcast %cst_34 : f32 to vector<1x128xf32>
    %47 = arith.maximumf %45, %46 : vector<1x128xf32>
    %c2_35 = arith.constant 2 : index
    %c0_36 = arith.constant 0 : index
    %c0_37 = arith.constant 0 : index
    %48 = vector.load %arg6[%c2_35, %c0_36, %c0_37] : memref<16x1x128xf32, #tpu.memory_space<vmem>>, vector<1x1x128xf32>
    %49 = vector.shape_cast %48 : vector<1x1x128xf32> to vector<1x128xf32>
    %50 = vector.shape_cast %43 : vector<1x128xf32> to vector<1x1x128xf32>
    tpu.vector_store %arg6[%c2_35, %c0_36, %c0_37], %50 {strides = array<i32>} : memref<16x1x128xf32, #tpu.memory_space<vmem>>, vector<1x1x128xf32>,
    %c13_38 = arith.constant 13 : index
    %c0_39 = arith.constant 0 : index
    %c0_40 = arith.constant 0 : index
    %51 = vector.load %arg7[%c13_38, %c0_39, %c0_40] : memref<16x1x128xf32, #tpu.memory_space<vmem>>, vector<1x1x128xf32>
    %52 = vector.shape_cast %51 : vector<1x1x128xf32> to vector<1x128xf32>
    %53 = vector.shape_cast %47 : vector<1x128xf32> to vector<1x1x128xf32>
    tpu.vector_store %arg7[%c13_38, %c0_39, %c0_40], %53 {strides = array<i32>} : memref<16x1x128xf32, #tpu.memory_space<vmem>>, vector<1x1x128xf32>,
    %c3 = arith.constant 3 : index
    %c0_41 = arith.constant 0 : index
    %c0_42 = arith.constant 0 : index
    %54 = vector.load %arg1[%c3, %c0_41, %c0_42] : memref<16x1x128xf32, #tpu.memory_space<vmem>>, vector<1x1x128xf32>
    %55 = vector.shape_cast %54 : vector<1x1x128xf32> to vector<1x128xf32>
    %56 = arith.addf %55, %1 : vector<1x128xf32>
    %c12 = arith.constant 12 : index
    %c0_43 = arith.constant 0 : index
    %c0_44 = arith.constant 0 : index
    %57 = vector.load %arg1[%c12, %c0_43, %c0_44] : memref<16x1x128xf32, #tpu.memory_space<vmem>>, vector<1x1x128xf32>
    %58 = vector.shape_cast %57 : vector<1x1x128xf32> to vector<1x128xf32>
    %59 = arith.addf %58, %3 : vector<1x128xf32>
    %60 = arith.mulf %43, %0 : vector<1x128xf32>
    %61 = arith.addf %60, %56 : vector<1x128xf32>
    %cst_45 = arith.constant 0.000000e+00 : f32
    %62 = vector.broadcast %cst_45 : f32 to vector<1x128xf32>
    %63 = arith.maximumf %61, %62 : vector<1x128xf32>
    %64 = arith.mulf %47, %2 : vector<1x128xf32>
    %65 = arith.addf %64, %59 : vector<1x128xf32>
    %cst_46 = arith.constant 0.000000e+00 : f32
    %66 = vector.broadcast %cst_46 : f32 to vector<1x128xf32>
    %67 = arith.maximumf %65, %66 : vector<1x128xf32>
    %c3_47 = arith.constant 3 : index
    %c0_48 = arith.constant 0 : index
    %c0_49 = arith.constant 0 : index
    %68 = vector.load %arg6[%c3_47, %c0_48, %c0_49] : memref<16x1x128xf32, #tpu.memory_space<vmem>>, vector<1x1x128xf32>
    %69 = vector.shape_cast %68 : vector<1x1x128xf32> to vector<1x128xf32>
    %70 = vector.shape_cast %63 : vector<1x128xf32> to vector<1x1x128xf32>
    tpu.vector_store %arg6[%c3_47, %c0_48, %c0_49], %70 {strides = array<i32>} : memref<16x1x128xf32, #tpu.memory_space<vmem>>, vector<1x1x128xf32>,
    %c12_50 = arith.constant 12 : index
    %c0_51 = arith.constant 0 : index
    %c0_52 = arith.constant 0 : index
    %71 = vector.load %arg7[%c12_50, %c0_51, %c0_52] : memref<16x1x128xf32, #tpu.memory_space<vmem>>, vector<1x1x128xf32>
    %72 = vector.shape_cast %71 : vector<1x1x128xf32> to vector<1x128xf32>
    %73 = vector.shape_cast %67 : vector<1x128xf32> to vector<1x1x128xf32>
    tpu.vector_store %arg7[%c12_50, %c0_51, %c0_52], %73 {strides = array<i32>} : memref<16x1x128xf32, #tpu.memory_space<vmem>>, vector<1x1x128xf32>,
    %c4 = arith.constant 4 : index
    %c0_53 = arith.constant 0 : index
    %c0_54 = arith.constant 0 : index
    %74 = vector.load %arg1[%c4, %c0_53, %c0_54] : memref<16x1x128xf32, #tpu.memory_space<vmem>>, vector<1x1x128xf32>
    %75 = vector.shape_cast %74 : vector<1x1x128xf32> to vector<1x128xf32>
    %76 = arith.addf %75, %1 : vector<1x128xf32>
    %c11 = arith.constant 11 : index
    %c0_55 = arith.constant 0 : index
    %c0_56 = arith.constant 0 : index
    %77 = vector.load %arg1[%c11, %c0_55, %c0_56] : memref<16x1x128xf32, #tpu.memory_space<vmem>>, vector<1x1x128xf32>
    %78 = vector.shape_cast %77 : vector<1x1x128xf32> to vector<1x128xf32>
    %79 = arith.addf %78, %3 : vector<1x128xf32>
    %80 = arith.mulf %63, %0 : vector<1x128xf32>
    %81 = arith.addf %80, %76 : vector<1x128xf32>
    %cst_57 = arith.constant 0.000000e+00 : f32
    %82 = vector.broadcast %cst_57 : f32 to vector<1x128xf32>
    %83 = arith.maximumf %81, %82 : vector<1x128xf32>
    %84 = arith.mulf %67, %2 : vector<1x128xf32>
    %85 = arith.addf %84, %79 : vector<1x128xf32>
    %cst_58 = arith.constant 0.000000e+00 : f32
    %86 = vector.broadcast %cst_58 : f32 to vector<1x128xf32>
    %87 = arith.maximumf %85, %86 : vector<1x128xf32>
    %c4_59 = arith.constant 4 : index
    %c0_60 = arith.constant 0 : index
    %c0_61 = arith.constant 0 : index
    %88 = vector.load %arg6[%c4_59, %c0_60, %c0_61] : memref<16x1x128xf32, #tpu.memory_space<vmem>>, vector<1x1x128xf32>
    %89 = vector.shape_cast %88 : vector<1x1x128xf32> to vector<1x128xf32>
    %90 = vector.shape_cast %83 : vector<1x128xf32> to vector<1x1x128xf32>
    tpu.vector_store %arg6[%c4_59, %c0_60, %c0_61], %90 {strides = array<i32>} : memref<16x1x128xf32, #tpu.memory_space<vmem>>, vector<1x1x128xf32>,
    %c11_62 = arith.constant 11 : index
    %c0_63 = arith.constant 0 : index
    %c0_64 = arith.constant 0 : index
    %91 = vector.load %arg7[%c11_62, %c0_63, %c0_64] : memref<16x1x128xf32, #tpu.memory_space<vmem>>, vector<1x1x128xf32>
    %92 = vector.shape_cast %91 : vector<1x1x128xf32> to vector<1x128xf32>
    %93 = vector.shape_cast %87 : vector<1x128xf32> to vector<1x1x128xf32>
    tpu.vector_store %arg7[%c11_62, %c0_63, %c0_64], %93 {strides = array<i32>} : memref<16x1x128xf32, #tpu.memory_space<vmem>>, vector<1x1x128xf32>,
    %c5 = arith.constant 5 : index
    %c0_65 = arith.constant 0 : index
    %c0_66 = arith.constant 0 : index
    %94 = vector.load %arg1[%c5, %c0_65, %c0_66] : memref<16x1x128xf32, #tpu.memory_space<vmem>>, vector<1x1x128xf32>
    %95 = vector.shape_cast %94 : vector<1x1x128xf32> to vector<1x128xf32>
    %96 = arith.addf %95, %1 : vector<1x128xf32>
    %c10 = arith.constant 10 : index
    %c0_67 = arith.constant 0 : index
    %c0_68 = arith.constant 0 : index
    %97 = vector.load %arg1[%c10, %c0_67, %c0_68] : memref<16x1x128xf32, #tpu.memory_space<vmem>>, vector<1x1x128xf32>
    %98 = vector.shape_cast %97 : vector<1x1x128xf32> to vector<1x128xf32>
    %99 = arith.addf %98, %3 : vector<1x128xf32>
    %100 = arith.mulf %83, %0 : vector<1x128xf32>
    %101 = arith.addf %100, %96 : vector<1x128xf32>
    %cst_69 = arith.constant 0.000000e+00 : f32
    %102 = vector.broadcast %cst_69 : f32 to vector<1x128xf32>
    %103 = arith.maximumf %101, %102 : vector<1x128xf32>
    %104 = arith.mulf %87, %2 : vector<1x128xf32>
    %105 = arith.addf %104, %99 : vector<1x128xf32>
    %cst_70 = arith.constant 0.000000e+00 : f32
    %106 = vector.broadcast %cst_70 : f32 to vector<1x128xf32>
    %107 = arith.maximumf %105, %106 : vector<1x128xf32>
    %c5_71 = arith.constant 5 : index
    %c0_72 = arith.constant 0 : index
    %c0_73 = arith.constant 0 : index
    %108 = vector.load %arg6[%c5_71, %c0_72, %c0_73] : memref<16x1x128xf32, #tpu.memory_space<vmem>>, vector<1x1x128xf32>
    %109 = vector.shape_cast %108 : vector<1x1x128xf32> to vector<1x128xf32>
    %110 = vector.shape_cast %103 : vector<1x128xf32> to vector<1x1x128xf32>
    tpu.vector_store %arg6[%c5_71, %c0_72, %c0_73], %110 {strides = array<i32>} : memref<16x1x128xf32, #tpu.memory_space<vmem>>, vector<1x1x128xf32>,
    %c10_74 = arith.constant 10 : index
    %c0_75 = arith.constant 0 : index
    %c0_76 = arith.constant 0 : index
    %111 = vector.load %arg7[%c10_74, %c0_75, %c0_76] : memref<16x1x128xf32, #tpu.memory_space<vmem>>, vector<1x1x128xf32>
    %112 = vector.shape_cast %111 : vector<1x1x128xf32> to vector<1x128xf32>
    %113 = vector.shape_cast %107 : vector<1x128xf32> to vector<1x1x128xf32>
    tpu.vector_store %arg7[%c10_74, %c0_75, %c0_76], %113 {strides = array<i32>} : memref<16x1x128xf32, #tpu.memory_space<vmem>>, vector<1x1x128xf32>,
    %c6 = arith.constant 6 : index
    %c0_77 = arith.constant 0 : index
    %c0_78 = arith.constant 0 : index
    %114 = vector.load %arg1[%c6, %c0_77, %c0_78] : memref<16x1x128xf32, #tpu.memory_space<vmem>>, vector<1x1x128xf32>
    %115 = vector.shape_cast %114 : vector<1x1x128xf32> to vector<1x128xf32>
    %116 = arith.addf %115, %1 : vector<1x128xf32>
    %c9 = arith.constant 9 : index
    %c0_79 = arith.constant 0 : index
    %c0_80 = arith.constant 0 : index
    %117 = vector.load %arg1[%c9, %c0_79, %c0_80] : memref<16x1x128xf32, #tpu.memory_space<vmem>>, vector<1x1x128xf32>
    %118 = vector.shape_cast %117 : vector<1x1x128xf32> to vector<1x128xf32>
    %119 = arith.addf %118, %3 : vector<1x128xf32>
    %120 = arith.mulf %103, %0 : vector<1x128xf32>
    %121 = arith.addf %120, %116 : vector<1x128xf32>
    %cst_81 = arith.constant 0.000000e+00 : f32
    %122 = vector.broadcast %cst_81 : f32 to vector<1x128xf32>
    %123 = arith.maximumf %121, %122 : vector<1x128xf32>
    %124 = arith.mulf %107, %2 : vector<1x128xf32>
    %125 = arith.addf %124, %119 : vector<1x128xf32>
    %cst_82 = arith.constant 0.000000e+00 : f32
    %126 = vector.broadcast %cst_82 : f32 to vector<1x128xf32>
    %127 = arith.maximumf %125, %126 : vector<1x128xf32>
    %c6_83 = arith.constant 6 : index
    %c0_84 = arith.constant 0 : index
    %c0_85 = arith.constant 0 : index
    %128 = vector.load %arg6[%c6_83, %c0_84, %c0_85] : memref<16x1x128xf32, #tpu.memory_space<vmem>>, vector<1x1x128xf32>
    %129 = vector.shape_cast %128 : vector<1x1x128xf32> to vector<1x128xf32>
    %130 = vector.shape_cast %123 : vector<1x128xf32> to vector<1x1x128xf32>
    tpu.vector_store %arg6[%c6_83, %c0_84, %c0_85], %130 {strides = array<i32>} : memref<16x1x128xf32, #tpu.memory_space<vmem>>, vector<1x1x128xf32>,
    %c9_86 = arith.constant 9 : index
    %c0_87 = arith.constant 0 : index
    %c0_88 = arith.constant 0 : index
    %131 = vector.load %arg7[%c9_86, %c0_87, %c0_88] : memref<16x1x128xf32, #tpu.memory_space<vmem>>, vector<1x1x128xf32>
    %132 = vector.shape_cast %131 : vector<1x1x128xf32> to vector<1x128xf32>
    %133 = vector.shape_cast %127 : vector<1x128xf32> to vector<1x1x128xf32>
    tpu.vector_store %arg7[%c9_86, %c0_87, %c0_88], %133 {strides = array<i32>} : memref<16x1x128xf32, #tpu.memory_space<vmem>>, vector<1x1x128xf32>,
    %c7 = arith.constant 7 : index
    %c0_89 = arith.constant 0 : index
    %c0_90 = arith.constant 0 : index
    %134 = vector.load %arg1[%c7, %c0_89, %c0_90] : memref<16x1x128xf32, #tpu.memory_space<vmem>>, vector<1x1x128xf32>
    %135 = vector.shape_cast %134 : vector<1x1x128xf32> to vector<1x128xf32>
    %136 = arith.addf %135, %1 : vector<1x128xf32>
    %c8 = arith.constant 8 : index
    %c0_91 = arith.constant 0 : index
    %c0_92 = arith.constant 0 : index
    %137 = vector.load %arg1[%c8, %c0_91, %c0_92] : memref<16x1x128xf32, #tpu.memory_space<vmem>>, vector<1x1x128xf32>
    %138 = vector.shape_cast %137 : vector<1x1x128xf32> to vector<1x128xf32>
    %139 = arith.addf %138, %3 : vector<1x128xf32>
    %140 = arith.mulf %123, %0 : vector<1x128xf32>
    %141 = arith.addf %140, %136 : vector<1x128xf32>
    %cst_93 = arith.constant 0.000000e+00 : f32
    %142 = vector.broadcast %cst_93 : f32 to vector<1x128xf32>
    %143 = arith.maximumf %141, %142 : vector<1x128xf32>
    %144 = arith.mulf %127, %2 : vector<1x128xf32>
    %145 = arith.addf %144, %139 : vector<1x128xf32>
    %cst_94 = arith.constant 0.000000e+00 : f32
    %146 = vector.broadcast %cst_94 : f32 to vector<1x128xf32>
    %147 = arith.maximumf %145, %146 : vector<1x128xf32>
    %c7_95 = arith.constant 7 : index
    %c0_96 = arith.constant 0 : index
    %c0_97 = arith.constant 0 : index
    %148 = vector.load %arg6[%c7_95, %c0_96, %c0_97] : memref<16x1x128xf32, #tpu.memory_space<vmem>>, vector<1x1x128xf32>
    %149 = vector.shape_cast %148 : vector<1x1x128xf32> to vector<1x128xf32>
    %150 = vector.shape_cast %143 : vector<1x128xf32> to vector<1x1x128xf32>
    tpu.vector_store %arg6[%c7_95, %c0_96, %c0_97], %150 {strides = array<i32>} : memref<16x1x128xf32, #tpu.memory_space<vmem>>, vector<1x1x128xf32>,
    %c8_98 = arith.constant 8 : index
    %c0_99 = arith.constant 0 : index
    %c0_100 = arith.constant 0 : index
    %151 = vector.load %arg7[%c8_98, %c0_99, %c0_100] : memref<16x1x128xf32, #tpu.memory_space<vmem>>, vector<1x1x128xf32>
    %152 = vector.shape_cast %151 : vector<1x1x128xf32> to vector<1x128xf32>
    %153 = vector.shape_cast %147 : vector<1x128xf32> to vector<1x1x128xf32>
    tpu.vector_store %arg7[%c8_98, %c0_99, %c0_100], %153 {strides = array<i32>} : memref<16x1x128xf32, #tpu.memory_space<vmem>>, vector<1x1x128xf32>,
    %c8_101 = arith.constant 8 : index
    %c0_102 = arith.constant 0 : index
    %c0_103 = arith.constant 0 : index
    %154 = vector.load %arg1[%c8_101, %c0_102, %c0_103] : memref<16x1x128xf32, #tpu.memory_space<vmem>>, vector<1x1x128xf32>
    %155 = vector.shape_cast %154 : vector<1x1x128xf32> to vector<1x128xf32>
    %156 = arith.addf %155, %1 : vector<1x128xf32>
    %c7_104 = arith.constant 7 : index
    %c0_105 = arith.constant 0 : index
    %c0_106 = arith.constant 0 : index
    %157 = vector.load %arg1[%c7_104, %c0_105, %c0_106] : memref<16x1x128xf32, #tpu.memory_space<vmem>>, vector<1x1x128xf32>
    %158 = vector.shape_cast %157 : vector<1x1x128xf32> to vector<1x128xf32>
    %159 = arith.addf %158, %3 : vector<1x128xf32>
    %160 = arith.mulf %143, %0 : vector<1x128xf32>
    %161 = arith.addf %160, %156 : vector<1x128xf32>
    %cst_107 = arith.constant 0.000000e+00 : f32
    %162 = vector.broadcast %cst_107 : f32 to vector<1x128xf32>
    %163 = arith.maximumf %161, %162 : vector<1x128xf32>
    %164 = arith.mulf %147, %2 : vector<1x128xf32>
    %165 = arith.addf %164, %159 : vector<1x128xf32>
    %cst_108 = arith.constant 0.000000e+00 : f32
    %166 = vector.broadcast %cst_108 : f32 to vector<1x128xf32>
    %167 = arith.maximumf %165, %166 : vector<1x128xf32>
    %c8_109 = arith.constant 8 : index
    %c0_110 = arith.constant 0 : index
    %c0_111 = arith.constant 0 : index
    %168 = vector.load %arg6[%c8_109, %c0_110, %c0_111] : memref<16x1x128xf32, #tpu.memory_space<vmem>>, vector<1x1x128xf32>
    %169 = vector.shape_cast %168 : vector<1x1x128xf32> to vector<1x128xf32>
    %170 = vector.shape_cast %163 : vector<1x128xf32> to vector<1x1x128xf32>
    tpu.vector_store %arg6[%c8_109, %c0_110, %c0_111], %170 {strides = array<i32>} : memref<16x1x128xf32, #tpu.memory_space<vmem>>, vector<1x1x128xf32>,
    %c7_112 = arith.constant 7 : index
    %c0_113 = arith.constant 0 : index
    %c0_114 = arith.constant 0 : index
    %171 = vector.load %arg7[%c7_112, %c0_113, %c0_114] : memref<16x1x128xf32, #tpu.memory_space<vmem>>, vector<1x1x128xf32>
    %172 = vector.shape_cast %171 : vector<1x1x128xf32> to vector<1x128xf32>
    %173 = vector.shape_cast %167 : vector<1x128xf32> to vector<1x1x128xf32>
    tpu.vector_store %arg7[%c7_112, %c0_113, %c0_114], %173 {strides = array<i32>} : memref<16x1x128xf32, #tpu.memory_space<vmem>>, vector<1x1x128xf32>,
    %c9_115 = arith.constant 9 : index
    %c0_116 = arith.constant 0 : index
    %c0_117 = arith.constant 0 : index
    %174 = vector.load %arg1[%c9_115, %c0_116, %c0_117] : memref<16x1x128xf32, #tpu.memory_space<vmem>>, vector<1x1x128xf32>
    %175 = vector.shape_cast %174 : vector<1x1x128xf32> to vector<1x128xf32>
    %176 = arith.addf %175, %1 : vector<1x128xf32>
    %c6_118 = arith.constant 6 : index
    %c0_119 = arith.constant 0 : index
    %c0_120 = arith.constant 0 : index
    %177 = vector.load %arg1[%c6_118, %c0_119, %c0_120] : memref<16x1x128xf32, #tpu.memory_space<vmem>>, vector<1x1x128xf32>
    %178 = vector.shape_cast %177 : vector<1x1x128xf32> to vector<1x128xf32>
    %179 = arith.addf %178, %3 : vector<1x128xf32>
    %180 = arith.mulf %163, %0 : vector<1x128xf32>
    %181 = arith.addf %180, %176 : vector<1x128xf32>
    %cst_121 = arith.constant 0.000000e+00 : f32
    %182 = vector.broadcast %cst_121 : f32 to vector<1x128xf32>
    %183 = arith.maximumf %181, %182 : vector<1x128xf32>
    %184 = arith.mulf %167, %2 : vector<1x128xf32>
    %185 = arith.addf %184, %179 : vector<1x128xf32>
    %cst_122 = arith.constant 0.000000e+00 : f32
    %186 = vector.broadcast %cst_122 : f32 to vector<1x128xf32>
    %187 = arith.maximumf %185, %186 : vector<1x128xf32>
    %c9_123 = arith.constant 9 : index
    %c0_124 = arith.constant 0 : index
    %c0_125 = arith.constant 0 : index
    %188 = vector.load %arg6[%c9_123, %c0_124, %c0_125] : memref<16x1x128xf32, #tpu.memory_space<vmem>>, vector<1x1x128xf32>
    %189 = vector.shape_cast %188 : vector<1x1x128xf32> to vector<1x128xf32>
    %190 = vector.shape_cast %183 : vector<1x128xf32> to vector<1x1x128xf32>
    tpu.vector_store %arg6[%c9_123, %c0_124, %c0_125], %190 {strides = array<i32>} : memref<16x1x128xf32, #tpu.memory_space<vmem>>, vector<1x1x128xf32>,
    %c6_126 = arith.constant 6 : index
    %c0_127 = arith.constant 0 : index
    %c0_128 = arith.constant 0 : index
    %191 = vector.load %arg7[%c6_126, %c0_127, %c0_128] : memref<16x1x128xf32, #tpu.memory_space<vmem>>, vector<1x1x128xf32>
    %192 = vector.shape_cast %191 : vector<1x1x128xf32> to vector<1x128xf32>
    %193 = vector.shape_cast %187 : vector<1x128xf32> to vector<1x1x128xf32>
    tpu.vector_store %arg7[%c6_126, %c0_127, %c0_128], %193 {strides = array<i32>} : memref<16x1x128xf32, #tpu.memory_space<vmem>>, vector<1x1x128xf32>,
    %c10_129 = arith.constant 10 : index
    %c0_130 = arith.constant 0 : index
    %c0_131 = arith.constant 0 : index
    %194 = vector.load %arg1[%c10_129, %c0_130, %c0_131] : memref<16x1x128xf32, #tpu.memory_space<vmem>>, vector<1x1x128xf32>
    %195 = vector.shape_cast %194 : vector<1x1x128xf32> to vector<1x128xf32>
    %196 = arith.addf %195, %1 : vector<1x128xf32>
    %c5_132 = arith.constant 5 : index
    %c0_133 = arith.constant 0 : index
    %c0_134 = arith.constant 0 : index
    %197 = vector.load %arg1[%c5_132, %c0_133, %c0_134] : memref<16x1x128xf32, #tpu.memory_space<vmem>>, vector<1x1x128xf32>
    %198 = vector.shape_cast %197 : vector<1x1x128xf32> to vector<1x128xf32>
    %199 = arith.addf %198, %3 : vector<1x128xf32>
    %200 = arith.mulf %183, %0 : vector<1x128xf32>
    %201 = arith.addf %200, %196 : vector<1x128xf32>
    %cst_135 = arith.constant 0.000000e+00 : f32
    %202 = vector.broadcast %cst_135 : f32 to vector<1x128xf32>
    %203 = arith.maximumf %201, %202 : vector<1x128xf32>
    %204 = arith.mulf %187, %2 : vector<1x128xf32>
    %205 = arith.addf %204, %199 : vector<1x128xf32>
    %cst_136 = arith.constant 0.000000e+00 : f32
    %206 = vector.broadcast %cst_136 : f32 to vector<1x128xf32>
    %207 = arith.maximumf %205, %206 : vector<1x128xf32>
    %c10_137 = arith.constant 10 : index
    %c0_138 = arith.constant 0 : index
    %c0_139 = arith.constant 0 : index
    %208 = vector.load %arg6[%c10_137, %c0_138, %c0_139] : memref<16x1x128xf32, #tpu.memory_space<vmem>>, vector<1x1x128xf32>
    %209 = vector.shape_cast %208 : vector<1x1x128xf32> to vector<1x128xf32>
    %210 = vector.shape_cast %203 : vector<1x128xf32> to vector<1x1x128xf32>
    tpu.vector_store %arg6[%c10_137, %c0_138, %c0_139], %210 {strides = array<i32>} : memref<16x1x128xf32, #tpu.memory_space<vmem>>, vector<1x1x128xf32>,
    %c5_140 = arith.constant 5 : index
    %c0_141 = arith.constant 0 : index
    %c0_142 = arith.constant 0 : index
    %211 = vector.load %arg7[%c5_140, %c0_141, %c0_142] : memref<16x1x128xf32, #tpu.memory_space<vmem>>, vector<1x1x128xf32>
    %212 = vector.shape_cast %211 : vector<1x1x128xf32> to vector<1x128xf32>
    %213 = vector.shape_cast %207 : vector<1x128xf32> to vector<1x1x128xf32>
    tpu.vector_store %arg7[%c5_140, %c0_141, %c0_142], %213 {strides = array<i32>} : memref<16x1x128xf32, #tpu.memory_space<vmem>>, vector<1x1x128xf32>,
    %c11_143 = arith.constant 11 : index
    %c0_144 = arith.constant 0 : index
    %c0_145 = arith.constant 0 : index
    %214 = vector.load %arg1[%c11_143, %c0_144, %c0_145] : memref<16x1x128xf32, #tpu.memory_space<vmem>>, vector<1x1x128xf32>
    %215 = vector.shape_cast %214 : vector<1x1x128xf32> to vector<1x128xf32>
    %216 = arith.addf %215, %1 : vector<1x128xf32>
    %c4_146 = arith.constant 4 : index
    %c0_147 = arith.constant 0 : index
    %c0_148 = arith.constant 0 : index
    %217 = vector.load %arg1[%c4_146, %c0_147, %c0_148] : memref<16x1x128xf32, #tpu.memory_space<vmem>>, vector<1x1x128xf32>
    %218 = vector.shape_cast %217 : vector<1x1x128xf32> to vector<1x128xf32>
    %219 = arith.addf %218, %3 : vector<1x128xf32>
    %220 = arith.mulf %203, %0 : vector<1x128xf32>
    %221 = arith.addf %220, %216 : vector<1x128xf32>
    %cst_149 = arith.constant 0.000000e+00 : f32
    %222 = vector.broadcast %cst_149 : f32 to vector<1x128xf32>
    %223 = arith.maximumf %221, %222 : vector<1x128xf32>
    %224 = arith.mulf %207, %2 : vector<1x128xf32>
    %225 = arith.addf %224, %219 : vector<1x128xf32>
    %cst_150 = arith.constant 0.000000e+00 : f32
    %226 = vector.broadcast %cst_150 : f32 to vector<1x128xf32>
    %227 = arith.maximumf %225, %226 : vector<1x128xf32>
    %c11_151 = arith.constant 11 : index
    %c0_152 = arith.constant 0 : index
    %c0_153 = arith.constant 0 : index
    %228 = vector.load %arg6[%c11_151, %c0_152, %c0_153] : memref<16x1x128xf32, #tpu.memory_space<vmem>>, vector<1x1x128xf32>
    %229 = vector.shape_cast %228 : vector<1x1x128xf32> to vector<1x128xf32>
    %230 = vector.shape_cast %223 : vector<1x128xf32> to vector<1x1x128xf32>
    tpu.vector_store %arg6[%c11_151, %c0_152, %c0_153], %230 {strides = array<i32>} : memref<16x1x128xf32, #tpu.memory_space<vmem>>, vector<1x1x128xf32>,
    %c4_154 = arith.constant 4 : index
    %c0_155 = arith.constant 0 : index
    %c0_156 = arith.constant 0 : index
    %231 = vector.load %arg7[%c4_154, %c0_155, %c0_156] : memref<16x1x128xf32, #tpu.memory_space<vmem>>, vector<1x1x128xf32>
    %232 = vector.shape_cast %231 : vector<1x1x128xf32> to vector<1x128xf32>
    %233 = vector.shape_cast %227 : vector<1x128xf32> to vector<1x1x128xf32>
    tpu.vector_store %arg7[%c4_154, %c0_155, %c0_156], %233 {strides = array<i32>} : memref<16x1x128xf32, #tpu.memory_space<vmem>>, vector<1x1x128xf32>,
    %c12_157 = arith.constant 12 : index
    %c0_158 = arith.constant 0 : index
    %c0_159 = arith.constant 0 : index
    %234 = vector.load %arg1[%c12_157, %c0_158, %c0_159] : memref<16x1x128xf32, #tpu.memory_space<vmem>>, vector<1x1x128xf32>
    %235 = vector.shape_cast %234 : vector<1x1x128xf32> to vector<1x128xf32>
    %236 = arith.addf %235, %1 : vector<1x128xf32>
    %c3_160 = arith.constant 3 : index
    %c0_161 = arith.constant 0 : index
    %c0_162 = arith.constant 0 : index
    %237 = vector.load %arg1[%c3_160, %c0_161, %c0_162] : memref<16x1x128xf32, #tpu.memory_space<vmem>>, vector<1x1x128xf32>
    %238 = vector.shape_cast %237 : vector<1x1x128xf32> to vector<1x128xf32>
    %239 = arith.addf %238, %3 : vector<1x128xf32>
    %240 = arith.mulf %223, %0 : vector<1x128xf32>
    %241 = arith.addf %240, %236 : vector<1x128xf32>
    %cst_163 = arith.constant 0.000000e+00 : f32
    %242 = vector.broadcast %cst_163 : f32 to vector<1x128xf32>
    %243 = arith.maximumf %241, %242 : vector<1x128xf32>
    %244 = arith.mulf %227, %2 : vector<1x128xf32>
    %245 = arith.addf %244, %239 : vector<1x128xf32>
    %cst_164 = arith.constant 0.000000e+00 : f32
    %246 = vector.broadcast %cst_164 : f32 to vector<1x128xf32>
    %247 = arith.maximumf %245, %246 : vector<1x128xf32>
    %c12_165 = arith.constant 12 : index
    %c0_166 = arith.constant 0 : index
    %c0_167 = arith.constant 0 : index
    %248 = vector.load %arg6[%c12_165, %c0_166, %c0_167] : memref<16x1x128xf32, #tpu.memory_space<vmem>>, vector<1x1x128xf32>
    %249 = vector.shape_cast %248 : vector<1x1x128xf32> to vector<1x128xf32>
    %250 = vector.shape_cast %243 : vector<1x128xf32> to vector<1x1x128xf32>
    tpu.vector_store %arg6[%c12_165, %c0_166, %c0_167], %250 {strides = array<i32>} : memref<16x1x128xf32, #tpu.memory_space<vmem>>, vector<1x1x128xf32>,
    %c3_168 = arith.constant 3 : index
    %c0_169 = arith.constant 0 : index
    %c0_170 = arith.constant 0 : index
    %251 = vector.load %arg7[%c3_168, %c0_169, %c0_170] : memref<16x1x128xf32, #tpu.memory_space<vmem>>, vector<1x1x128xf32>
    %252 = vector.shape_cast %251 : vector<1x1x128xf32> to vector<1x128xf32>
    %253 = vector.shape_cast %247 : vector<1x128xf32> to vector<1x1x128xf32>
    tpu.vector_store %arg7[%c3_168, %c0_169, %c0_170], %253 {strides = array<i32>} : memref<16x1x128xf32, #tpu.memory_space<vmem>>, vector<1x1x128xf32>,
    %c13_171 = arith.constant 13 : index
    %c0_172 = arith.constant 0 : index
    %c0_173 = arith.constant 0 : index
    %254 = vector.load %arg1[%c13_171, %c0_172, %c0_173] : memref<16x1x128xf32, #tpu.memory_space<vmem>>, vector<1x1x128xf32>
    %255 = vector.shape_cast %254 : vector<1x1x128xf32> to vector<1x128xf32>
    %256 = arith.addf %255, %1 : vector<1x128xf32>
    %c2_174 = arith.constant 2 : index
    %c0_175 = arith.constant 0 : index
    %c0_176 = arith.constant 0 : index
    %257 = vector.load %arg1[%c2_174, %c0_175, %c0_176] : memref<16x1x128xf32, #tpu.memory_space<vmem>>, vector<1x1x128xf32>
    %258 = vector.shape_cast %257 : vector<1x1x128xf32> to vector<1x128xf32>
    %259 = arith.addf %258, %3 : vector<1x128xf32>
    %260 = arith.mulf %243, %0 : vector<1x128xf32>
    %261 = arith.addf %260, %256 : vector<1x128xf32>
    %cst_177 = arith.constant 0.000000e+00 : f32
    %262 = vector.broadcast %cst_177 : f32 to vector<1x128xf32>
    %263 = arith.maximumf %261, %262 : vector<1x128xf32>
    %264 = arith.mulf %247, %2 : vector<1x128xf32>
    %265 = arith.addf %264, %259 : vector<1x128xf32>
    %cst_178 = arith.constant 0.000000e+00 : f32
    %266 = vector.broadcast %cst_178 : f32 to vector<1x128xf32>
    %267 = arith.maximumf %265, %266 : vector<1x128xf32>
    %c13_179 = arith.constant 13 : index
    %c0_180 = arith.constant 0 : index
    %c0_181 = arith.constant 0 : index
    %268 = vector.load %arg6[%c13_179, %c0_180, %c0_181] : memref<16x1x128xf32, #tpu.memory_space<vmem>>, vector<1x1x128xf32>
    %269 = vector.shape_cast %268 : vector<1x1x128xf32> to vector<1x128xf32>
    %270 = vector.shape_cast %263 : vector<1x128xf32> to vector<1x1x128xf32>
    tpu.vector_store %arg6[%c13_179, %c0_180, %c0_181], %270 {strides = array<i32>} : memref<16x1x128xf32, #tpu.memory_space<vmem>>, vector<1x1x128xf32>,
    %c2_182 = arith.constant 2 : index
    %c0_183 = arith.constant 0 : index
    %c0_184 = arith.constant 0 : index
    %271 = vector.load %arg7[%c2_182, %c0_183, %c0_184] : memref<16x1x128xf32, #tpu.memory_space<vmem>>, vector<1x1x128xf32>
    %272 = vector.shape_cast %271 : vector<1x1x128xf32> to vector<1x128xf32>
    %273 = vector.shape_cast %267 : vector<1x128xf32> to vector<1x1x128xf32>
    tpu.vector_store %arg7[%c2_182, %c0_183, %c0_184], %273 {strides = array<i32>} : memref<16x1x128xf32, #tpu.memory_space<vmem>>, vector<1x1x128xf32>,
    %c14_185 = arith.constant 14 : index
    %c0_186 = arith.constant 0 : index
    %c0_187 = arith.constant 0 : index
    %274 = vector.load %arg1[%c14_185, %c0_186, %c0_187] : memref<16x1x128xf32, #tpu.memory_space<vmem>>, vector<1x1x128xf32>
    %275 = vector.shape_cast %274 : vector<1x1x128xf32> to vector<1x128xf32>
    %276 = arith.addf %275, %1 : vector<1x128xf32>
    %c1_188 = arith.constant 1 : index
    %c0_189 = arith.constant 0 : index
    %c0_190 = arith.constant 0 : index
    %277 = vector.load %arg1[%c1_188, %c0_189, %c0_190] : memref<16x1x128xf32, #tpu.memory_space<vmem>>, vector<1x1x128xf32>
    %278 = vector.shape_cast %277 : vector<1x1x128xf32> to vector<1x128xf32>
    %279 = arith.addf %278, %3 : vector<1x128xf32>
    %280 = arith.mulf %263, %0 : vector<1x128xf32>
    %281 = arith.addf %280, %276 : vector<1x128xf32>
    %cst_191 = arith.constant 0.000000e+00 : f32
    %282 = vector.broadcast %cst_191 : f32 to vector<1x128xf32>
    %283 = arith.maximumf %281, %282 : vector<1x128xf32>
    %284 = arith.mulf %267, %2 : vector<1x128xf32>
    %285 = arith.addf %284, %279 : vector<1x128xf32>
    %cst_192 = arith.constant 0.000000e+00 : f32
    %286 = vector.broadcast %cst_192 : f32 to vector<1x128xf32>
    %287 = arith.maximumf %285, %286 : vector<1x128xf32>
    %c14_193 = arith.constant 14 : index
    %c0_194 = arith.constant 0 : index
    %c0_195 = arith.constant 0 : index
    %288 = vector.load %arg6[%c14_193, %c0_194, %c0_195] : memref<16x1x128xf32, #tpu.memory_space<vmem>>, vector<1x1x128xf32>
    %289 = vector.shape_cast %288 : vector<1x1x128xf32> to vector<1x128xf32>
    %290 = vector.shape_cast %283 : vector<1x128xf32> to vector<1x1x128xf32>
    tpu.vector_store %arg6[%c14_193, %c0_194, %c0_195], %290 {strides = array<i32>} : memref<16x1x128xf32, #tpu.memory_space<vmem>>, vector<1x1x128xf32>,
    %c1_196 = arith.constant 1 : index
    %c0_197 = arith.constant 0 : index
    %c0_198 = arith.constant 0 : index
    %291 = vector.load %arg7[%c1_196, %c0_197, %c0_198] : memref<16x1x128xf32, #tpu.memory_space<vmem>>, vector<1x1x128xf32>
    %292 = vector.shape_cast %291 : vector<1x1x128xf32> to vector<1x128xf32>
    %293 = vector.shape_cast %287 : vector<1x128xf32> to vector<1x1x128xf32>
    tpu.vector_store %arg7[%c1_196, %c0_197, %c0_198], %293 {strides = array<i32>} : memref<16x1x128xf32, #tpu.memory_space<vmem>>, vector<1x1x128xf32>,
    %c15_199 = arith.constant 15 : index
    %c0_200 = arith.constant 0 : index
    %c0_201 = arith.constant 0 : index
    %294 = vector.load %arg1[%c15_199, %c0_200, %c0_201] : memref<16x1x128xf32, #tpu.memory_space<vmem>>, vector<1x1x128xf32>
    %295 = vector.shape_cast %294 : vector<1x1x128xf32> to vector<1x128xf32>
    %296 = arith.addf %295, %1 : vector<1x128xf32>
    %c0_202 = arith.constant 0 : index
    %c0_203 = arith.constant 0 : index
    %c0_204 = arith.constant 0 : index
    %297 = vector.load %arg1[%c0_202, %c0_203, %c0_204] : memref<16x1x128xf32, #tpu.memory_space<vmem>>, vector<1x1x128xf32>
    %298 = vector.shape_cast %297 : vector<1x1x128xf32> to vector<1x128xf32>
    %299 = arith.addf %298, %3 : vector<1x128xf32>
    %300 = arith.mulf %283, %0 : vector<1x128xf32>
    %301 = arith.addf %300, %296 : vector<1x128xf32>
    %cst_205 = arith.constant 0.000000e+00 : f32
    %302 = vector.broadcast %cst_205 : f32 to vector<1x128xf32>
    %303 = arith.maximumf %301, %302 : vector<1x128xf32>
    %304 = arith.mulf %287, %2 : vector<1x128xf32>
    %305 = arith.addf %304, %299 : vector<1x128xf32>
    %cst_206 = arith.constant 0.000000e+00 : f32
    %306 = vector.broadcast %cst_206 : f32 to vector<1x128xf32>
    %307 = arith.maximumf %305, %306 : vector<1x128xf32>
    %c15_207 = arith.constant 15 : index
    %c0_208 = arith.constant 0 : index
    %c0_209 = arith.constant 0 : index
    %308 = vector.load %arg6[%c15_207, %c0_208, %c0_209] : memref<16x1x128xf32, #tpu.memory_space<vmem>>, vector<1x1x128xf32>
    %309 = vector.shape_cast %308 : vector<1x1x128xf32> to vector<1x128xf32>
    %310 = vector.shape_cast %303 : vector<1x128xf32> to vector<1x1x128xf32>
    tpu.vector_store %arg6[%c15_207, %c0_208, %c0_209], %310 {strides = array<i32>} : memref<16x1x128xf32, #tpu.memory_space<vmem>>, vector<1x1x128xf32>,
    %c0_210 = arith.constant 0 : index
    %c0_211 = arith.constant 0 : index
    %c0_212 = arith.constant 0 : index
    %311 = vector.load %arg7[%c0_210, %c0_211, %c0_212] : memref<16x1x128xf32, #tpu.memory_space<vmem>>, vector<1x1x128xf32>
    %312 = vector.shape_cast %311 : vector<1x1x128xf32> to vector<1x128xf32>
    %313 = vector.shape_cast %307 : vector<1x128xf32> to vector<1x1x128xf32>
    tpu.vector_store %arg7[%c0_210, %c0_211, %c0_212], %313 {strides = array<i32>} : memref<16x1x128xf32, #tpu.memory_space<vmem>>, vector<1x1x128xf32>,
    return
  }
  func.func @transform_0(%arg0: i32) -> (i32, i32, i32) {
    %c0_i32 = arith.constant 0 : i32
    %c0_i32_0 = arith.constant 0 : i32
    %c0_i32_1 = arith.constant 0 : i32
    return %c0_i32, %arg0, %c0_i32_0 : i32, i32, i32
  }
  func.func @transform_1(%arg0: i32) -> (i32, i32) {
    %c0_i32 = arith.constant 0 : i32
    %c0_i32_0 = arith.constant 0 : i32
    return %arg0, %c0_i32 : i32, i32
  }
  func.func @transform_2(%arg0: i32) -> (i32, i32) {
    %c0_i32 = arith.constant 0 : i32
    %c0_i32_0 = arith.constant 0 : i32
    return %arg0, %c0_i32 : i32, i32
  }
  func.func @transform_3(%arg0: i32) -> (i32, i32) {
    %c0_i32 = arith.constant 0 : i32
    %c0_i32_0 = arith.constant 0 : i32
    return %arg0, %c0_i32 : i32, i32
  }
  func.func @transform_4(%arg0: i32) -> (i32, i32) {
    %c0_i32 = arith.constant 0 : i32
    %c0_i32_0 = arith.constant 0 : i32
    return %arg0, %c0_i32 : i32, i32
  }
  func.func @transform_5(%arg0: i32) -> (i32, i32, i32) {
    %c0_i32 = arith.constant 0 : i32
    %c0_i32_0 = arith.constant 0 : i32
    %c0_i32_1 = arith.constant 0 : i32
    return %c0_i32, %arg0, %c0_i32_0 : i32, i32, i32
  }
  func.func @transform_6(%arg0: i32) -> (i32, i32, i32) {
    %c0_i32 = arith.constant 0 : i32
    %c0_i32_0 = arith.constant 0 : i32
    %c0_i32_1 = arith.constant 0 : i32
    return %c0_i32, %arg0, %c0_i32_0 : i32, i32, i32
  }
}

</mosaic_0001>

<llo_original>
// kernel: spacial_irnn_forward.2
$region0: #{spacial_irnn_forward.2}
  #allocation0 [shape = 'u32[]', space=smem, size = 0x4, offset = 0x4, fixed_abs, tag = 'smem constant byte address 0x4 - core index']
  #allocation1 [shape = 'u32[144,128]{1,0:T(1,128)}', space=vmem, size = 0x12000, scoped, tag = 'internal scratch']
  %s0 = inlined_call_operand.vmem [shape: f32[16,1,128], index: 0, kind: input, shape index: {}]
  %s1 = inlined_call_operand.vmem [shape: f32[1,128], index: 1, kind: input, shape index: {}]
  %s2 = inlined_call_operand.vmem [shape: f32[1,128], index: 2, kind: input, shape index: {}]
  %s3 = inlined_call_operand.vmem [shape: f32[1,128], index: 3, kind: input, shape index: {}]
  %s4 = inlined_call_operand.vmem [shape: f32[1,128], index: 4, kind: input, shape index: {}]
  %s5 = inlined_call_operand.vmem [shape: f32[16,1,128], index: 5, kind: output, shape index: {0}]
  %s6 = inlined_call_operand.vmem [shape: f32[16,1,128], index: 6, kind: output, shape index: {1}]
  %7 = xla_tuple %s5, %s6
  %s8 = sld [smem:[#allocation0]]
  $region38: #{spacial_irnn_forward.2} parent=0
    _
  %s10 = ssub.s32 1, %s8
  %s11 = scalar_select 0, %s10, %s8
  // Predicated region
  $region2: #{spacial_irnn_forward.2} parent=0 // pred_check
    _
  $region3: #{spacial_irnn_forward.2} parent=0 // pred_check_branch
    %13 = sbr.rel (0) target = $region5
  $region4: #{spacial_irnn_forward.2} parent=0 // pred_region
    _
  $region5: #{spacial_irnn_forward.2} parent=0 // pred_fallthru
    _
  // Predicated region
  $region6: #{spacial_irnn_forward.2} parent=0 // pred_check
    _
  $region7: #{spacial_irnn_forward.2} parent=0 // pred_check_branch
    %15 = sbr.rel (0) target = $region9
  $region8: #{spacial_irnn_forward.2} parent=0 // pred_region
    _
  $region9: #{spacial_irnn_forward.2} parent=0 // pred_fallthru
    _
  // Predicated region
  $region10: #{spacial_irnn_forward.2} parent=0 // pred_check
    _
  $region11: #{spacial_irnn_forward.2} parent=0 // pred_check_branch
    %17 = sbr.rel (0) target = $region13
  $region12: #{spacial_irnn_forward.2} parent=0 // pred_region
    _
  $region13: #{spacial_irnn_forward.2} parent=0 // pred_fallthru
    _
  // Predicated region
  $region14: #{spacial_irnn_forward.2} parent=0 // pred_check
    _
  $region15: #{spacial_irnn_forward.2} parent=0 // pred_check_branch
    %19 = sbr.rel (0) target = $region17
  $region16: #{spacial_irnn_forward.2} parent=0 // pred_region
    _
  $region17: #{spacial_irnn_forward.2} parent=0 // pred_fallthru
    _
  // Predicated region
  $region18: #{spacial_irnn_forward.2} parent=0 // pred_check
    _
  $region19: #{spacial_irnn_forward.2} parent=0 // pred_check_branch
    %21 = sbr.rel (0) target = $region21
  $region20: #{spacial_irnn_forward.2} parent=0 // pred_region
    _
  $region21: #{spacial_irnn_forward.2} parent=0 // pred_fallthru
    _
  %v22 = vld [vmem:[%s1] sm:$0x1]
  %v23 = vld [vmem:[%s2] sm:$0x1]
  %v24 = vld [vmem:[%s3] sm:$0x1]
  %v25 = vld [vmem:[%s4] sm:$0x1]
  %v26 = vld [vmem:[%s0] sm:$0x1]
  %s27 = scalar_lea.vmem %s0, 15
  %v28 = vld [vmem:[%s27] sm:$0x1]
  %29 = vst [vmem:[%s5] sm:$0x1] %v26
  %s30 = scalar_lea.vmem %s6, 15
  %31 = vst [vmem:[%s30] sm:$0x1] %v28
  %s32 = scalar_lea.vmem %s0, 1
  %v33 = vld [vmem:[%s32] sm:$0x1]
  %v34 = vadd.f32 %v33, %v23
  %s35 = scalar_lea.vmem %s0, 14
  %v36 = vld [vmem:[%s35] sm:$0x1]
  %v37 = vadd.f32 %v36, %v25
  %v38 = vmul.f32 %v26, %v22
  %v39 = vadd.f32 %v38, %v34
  %v40 = vmax.f32 %v39, 0.0
  %v41 = vmul.f32 %v28, %v24
  %v42 = vadd.f32 %v41, %v37
  %v43 = vmax.f32 %v42, 0.0
  %s44 = scalar_lea.vmem %s5, 1
  %45 = vst [vmem:[%s44] sm:$0x1] %v40
  %s46 = scalar_lea.vmem %s6, 14
  %47 = vst [vmem:[%s46] sm:$0x1] %v43
  %s48 = scalar_lea.vmem %s0, 2
  %v49 = vld [vmem:[%s48] sm:$0x1]
  %v50 = vadd.f32 %v49, %v23
  %s51 = scalar_lea.vmem %s0, 13
  %v52 = vld [vmem:[%s51] sm:$0x1]
  %v53 = vadd.f32 %v52, %v25
  %v54 = vmul.f32 %v40, %v22
  %v55 = vadd.f32 %v54, %v50
  %v56 = vmax.f32 %v55, 0.0
  %v57 = vmul.f32 %v43, %v24
  %v58 = vadd.f32 %v57, %v53
  %v59 = vmax.f32 %v58, 0.0
  %s60 = scalar_lea.vmem %s5, 2
  %61 = vst [vmem:[%s60] sm:$0x1] %v56
  %s62 = scalar_lea.vmem %s6, 13
  %63 = vst [vmem:[%s62] sm:$0x1] %v59
  %s64 = scalar_lea.vmem %s0, 3
  %v65 = vld [vmem:[%s64] sm:$0x1]
  %v66 = vadd.f32 %v65, %v23
  %s67 = scalar_lea.vmem %s0, 12
  %v68 = vld [vmem:[%s67] sm:$0x1]
  %v69 = vadd.f32 %v68, %v25
  %v70 = vmul.f32 %v56, %v22
  %v71 = vadd.f32 %v70, %v66
  %v72 = vmax.f32 %v71, 0.0
  %v73 = vmul.f32 %v59, %v24
  %v74 = vadd.f32 %v73, %v69
  %v75 = vmax.f32 %v74, 0.0
  %s76 = scalar_lea.vmem %s5, 3
  %77 = vst [vmem:[%s76] sm:$0x1] %v72
  %s78 = scalar_lea.vmem %s6, 12
  %79 = vst [vmem:[%s78] sm:$0x1] %v75
  %s80 = scalar_lea.vmem %s0, 4
  %v81 = vld [vmem:[%s80] sm:$0x1]
  %v82 = vadd.f32 %v81, %v23
  %s83 = scalar_lea.vmem %s0, 11
  %v84 = vld [vmem:[%s83] sm:$0x1]
  %v85 = vadd.f32 %v84, %v25
  %v86 = vmul.f32 %v72, %v22
  %v87 = vadd.f32 %v86, %v82
  %v88 = vmax.f32 %v87, 0.0
  %v89 = vmul.f32 %v75, %v24
  %v90 = vadd.f32 %v89, %v85
  %v91 = vmax.f32 %v90, 0.0
  %s92 = scalar_lea.vmem %s5, 4
  %93 = vst [vmem:[%s92] sm:$0x1] %v88
  %s94 = scalar_lea.vmem %s6, 11
  %95 = vst [vmem:[%s94] sm:$0x1] %v91
  %s96 = scalar_lea.vmem %s0, 5
  %v97 = vld [vmem:[%s96] sm:$0x1]
  %v98 = vadd.f32 %v97, %v23
  %s99 = scalar_lea.vmem %s0, 10
  %v100 = vld [vmem:[%s99] sm:$0x1]
  %v101 = vadd.f32 %v100, %v25
  %v102 = vmul.f32 %v88, %v22
  %v103 = vadd.f32 %v102, %v98
  %v104 = vmax.f32 %v103, 0.0
  %v105 = vmul.f32 %v91, %v24
  %v106 = vadd.f32 %v105, %v101
  %v107 = vmax.f32 %v106, 0.0
  %s108 = scalar_lea.vmem %s5, 5
  %109 = vst [vmem:[%s108] sm:$0x1] %v104
  %s110 = scalar_lea.vmem %s6, 10
  %111 = vst [vmem:[%s110] sm:$0x1] %v107
  %s112 = scalar_lea.vmem %s0, 6
  %v113 = vld [vmem:[%s112] sm:$0x1]
  %v114 = vadd.f32 %v113, %v23
  %s115 = scalar_lea.vmem %s0, 9
  %v116 = vld [vmem:[%s115] sm:$0x1]
  %v117 = vadd.f32 %v116, %v25
  %v118 = vmul.f32 %v104, %v22
  %v119 = vadd.f32 %v118, %v114
  %v120 = vmax.f32 %v119, 0.0
  %v121 = vmul.f32 %v107, %v24
  %v122 = vadd.f32 %v121, %v117
  %v123 = vmax.f32 %v122, 0.0
  %s124 = scalar_lea.vmem %s5, 6
  %125 = vst [vmem:[%s124] sm:$0x1] %v120
  %s126 = scalar_lea.vmem %s6, 9
  %127 = vst [vmem:[%s126] sm:$0x1] %v123
  %s128 = scalar_lea.vmem %s0, 7
  %v129 = vld [vmem:[%s128] sm:$0x1]
  %v130 = vadd.f32 %v129, %v23
  %s131 = scalar_lea.vmem %s0, 8
  %v132 = vld [vmem:[%s131] sm:$0x1]
  %v133 = vadd.f32 %v132, %v25
  %v134 = vmul.f32 %v120, %v22
  %v135 = vadd.f32 %v134, %v130
  %v136 = vmax.f32 %v135, 0.0
  %v137 = vmul.f32 %v123, %v24
  %v138 = vadd.f32 %v137, %v133
  %v139 = vmax.f32 %v138, 0.0
  %s140 = scalar_lea.vmem %s5, 7
  %141 = vst [vmem:[%s140] sm:$0x1] %v136
  %s142 = scalar_lea.vmem %s6, 8
  %143 = vst [vmem:[%s142] sm:$0x1] %v139
  %v144 = vld [vmem:[%s131] sm:$0x1]
  %v145 = vadd.f32 %v144, %v23
  %v146 = vld [vmem:[%s128] sm:$0x1]
  %v147 = vadd.f32 %v146, %v25
  %v148 = vmul.f32 %v136, %v22
  %v149 = vadd.f32 %v148, %v145
  %v150 = vmax.f32 %v149, 0.0
  %v151 = vmul.f32 %v139, %v24
  %v152 = vadd.f32 %v151, %v147
  %v153 = vmax.f32 %v152, 0.0
  %s154 = scalar_lea.vmem %s5, 8
  %155 = vst [vmem:[%s154] sm:$0x1] %v150
  %s156 = scalar_lea.vmem %s6, 7
  %157 = vst [vmem:[%s156] sm:$0x1] %v153
  %v158 = vld [vmem:[%s115] sm:$0x1]
  %v159 = vadd.f32 %v158, %v23
  %v160 = vld [vmem:[%s112] sm:$0x1]
  %v161 = vadd.f32 %v160, %v25
  %v162 = vmul.f32 %v150, %v22
  %v163 = vadd.f32 %v162, %v159
  %v164 = vmax.f32 %v163, 0.0
  %v165 = vmul.f32 %v153, %v24
  %v166 = vadd.f32 %v165, %v161
  %v167 = vmax.f32 %v166, 0.0
  %s168 = scalar_lea.vmem %s5, 9
  %169 = vst [vmem:[%s168] sm:$0x1] %v164
  %s170 = scalar_lea.vmem %s6, 6
  %171 = vst [vmem:[%s170] sm:$0x1] %v167
  %v172 = vld [vmem:[%s99] sm:$0x1]
  %v173 = vadd.f32 %v172, %v23
  %v174 = vld [vmem:[%s96] sm:$0x1]
  %v175 = vadd.f32 %v174, %v25
  %v176 = vmul.f32 %v164, %v22
  %v177 = vadd.f32 %v176, %v173
  %v178 = vmax.f32 %v177, 0.0
  %v179 = vmul.f32 %v167, %v24
  %v180 = vadd.f32 %v179, %v175
  %v181 = vmax.f32 %v180, 0.0
  %s182 = scalar_lea.vmem %s5, 10
  %183 = vst [vmem:[%s182] sm:$0x1] %v178
  %s184 = scalar_lea.vmem %s6, 5
  %185 = vst [vmem:[%s184] sm:$0x1] %v181
  %v186 = vld [vmem:[%s83] sm:$0x1]
  %v187 = vadd.f32 %v186, %v23
  %v188 = vld [vmem:[%s80] sm:$0x1]
  %v189 = vadd.f32 %v188, %v25
  %v190 = vmul.f32 %v178, %v22
  %v191 = vadd.f32 %v190, %v187
  %v192 = vmax.f32 %v191, 0.0
  %v193 = vmul.f32 %v181, %v24
  %v194 = vadd.f32 %v193, %v189
  %v195 = vmax.f32 %v194, 0.0
  %s196 = scalar_lea.vmem %s5, 11
  %197 = vst [vmem:[%s196] sm:$0x1] %v192
  %s198 = scalar_lea.vmem %s6, 4
  %199 = vst [vmem:[%s198] sm:$0x1] %v195
  %v200 = vld [vmem:[%s67] sm:$0x1]
  %v201 = vadd.f32 %v200, %v23
  %v202 = vld [vmem:[%s64] sm:$0x1]
  %v203 = vadd.f32 %v202, %v25
  %v204 = vmul.f32 %v192, %v22
  %v205 = vadd.f32 %v204, %v201
  %v206 = vmax.f32 %v205, 0.0
  %v207 = vmul.f32 %v195, %v24
  %v208 = vadd.f32 %v207, %v203
  %v209 = vmax.f32 %v208, 0.0
  %s210 = scalar_lea.vmem %s5, 12
  %211 = vst [vmem:[%s210] sm:$0x1] %v206
  %s212 = scalar_lea.vmem %s6, 3
  %213 = vst [vmem:[%s212] sm:$0x1] %v209
  %v214 = vld [vmem:[%s51] sm:$0x1]
  %v215 = vadd.f32 %v214, %v23
  %v216 = vld [vmem:[%s48] sm:$0x1]
  %v217 = vadd.f32 %v216, %v25
  %v218 = vmul.f32 %v206, %v22
  %v219 = vadd.f32 %v218, %v215
  %v220 = vmax.f32 %v219, 0.0
  %v221 = vmul.f32 %v209, %v24
  %v222 = vadd.f32 %v221, %v217
  %v223 = vmax.f32 %v222, 0.0
  %s224 = scalar_lea.vmem %s5, 13
  %225 = vst [vmem:[%s224] sm:$0x1] %v220
  %s226 = scalar_lea.vmem %s6, 2
  %227 = vst [vmem:[%s226] sm:$0x1] %v223
  %v228 = vld [vmem:[%s35] sm:$0x1]
  %v229 = vadd.f32 %v228, %v23
  %v230 = vld [vmem:[%s32] sm:$0x1]
  %v231 = vadd.f32 %v230, %v25
  %v232 = vmul.f32 %v220, %v22
  %v233 = vadd.f32 %v232, %v229
  %v234 = vmax.f32 %v233, 0.0
  %v235 = vmul.f32 %v223, %v24
  %v236 = vadd.f32 %v235, %v231
  %v237 = vmax.f32 %v236, 0.0
  %s238 = scalar_lea.vmem %s5, 14
  %239 = vst [vmem:[%s238] sm:$0x1] %v234
  %s240 = scalar_lea.vmem %s6, 1
  %241 = vst [vmem:[%s240] sm:$0x1] %v237
  %v242 = vld [vmem:[%s27] sm:$0x1]
  %v243 = vadd.f32 %v242, %v23
  %v244 = vld [vmem:[%s0] sm:$0x1]
  %v245 = vadd.f32 %v244, %v25
  %v246 = vmul.f32 %v234, %v22
  %v247 = vadd.f32 %v246, %v243
  %v248 = vmax.f32 %v247, 0.0
  %v249 = vmul.f32 %v237, %v24
  %v250 = vadd.f32 %v249, %v245
  %v251 = vmax.f32 %v250, 0.0
  %s252 = scalar_lea.vmem %s5, 15
  %253 = vst [vmem:[%s252] sm:$0x1] %v248
  %254 = vst [vmem:[%s6] sm:$0x1] %v251
  // Predicated region
  $region22: #{spacial_irnn_forward.2} parent=0 // pred_check
    _
  $region23: #{spacial_irnn_forward.2} parent=0 // pred_check_branch
    %256 = sbr.rel (0) target = $region25
  $region24: #{spacial_irnn_forward.2} parent=0 // pred_region
    _
  $region25: #{spacial_irnn_forward.2} parent=0 // pred_fallthru
    _
  // Predicated region
  $region26: #{spacial_irnn_forward.2} parent=0 // pred_check
    _
  $region27: #{spacial_irnn_forward.2} parent=0 // pred_check_branch
    %258 = sbr.rel (0) target = $region29
  $region28: #{spacial_irnn_forward.2} parent=0 // pred_region
    _
  $region29: #{spacial_irnn_forward.2} parent=0 // pred_fallthru
    _
  // Predicated region
  $region30: #{spacial_irnn_forward.2} parent=0 // pred_check
    _
  $region31: #{spacial_irnn_forward.2} parent=0 // pred_check_branch
    %260 = sbr.rel (0) target = $region33
  $region32: #{spacial_irnn_forward.2} parent=0 // pred_region
    _
  $region33: #{spacial_irnn_forward.2} parent=0 // pred_fallthru
    _
  // Predicated region
  $region34: #{spacial_irnn_forward.2} parent=0 // pred_check
    _
  $region35: #{spacial_irnn_forward.2} parent=0 // pred_check_branch
    %262 = sbr.rel (0) target = $region37
  $region36: #{spacial_irnn_forward.2} parent=0 // pred_region
    _
  $region37: #{spacial_irnn_forward.2} parent=0 // pred_fallthru
    _

</llo_original>
